<compile_context>
chip_gen: v7x
topology: tpu7x:2x2x1
jax: 0.10.0
libtpu: 0.0.40
codegen_flags: <defaults>
</compile_context>

<pallas_src>
import jax
import jax.numpy as jnp
from jax.experimental import pallas as pl
from jax.experimental.pallas import tpu as pltpu


_SQRT_2_OVER_PI = 0.7978845608028654


def _gelu_tanh(x):
    # tanh-approximate GELU (EUP tanh).  nn.GELU() default is the exact erf
    # form; the tanh approximation deviates by <~1e-3 and is the standard
    # TPU-kernel choice.  The pure-JAX reference below uses the same formula.
    return 0.5 * x * (1.0 + jnp.tanh(_SQRT_2_OVER_PI * (x + 0.044715 * x * x * x)))


def _ffn_kernel(x_ref, w1_ref, b1_ref, w2_ref, b2_ref, o_ref, acc_ref):
    # Grid: (row tiles [parallel], hidden tiles [arbitrary / reduction]).
    # x_ref:  (tm, d_in)     w1_ref: (d_in, tH)    b1_ref: (1, tH)
    # w2_ref: (tH, d_out)    b2_ref: (1, d_out)    o_ref:  (tm, d_out)
    # acc_ref: (tm, d_out) f32 scratch accumulating fc2 partial sums over tH.
    k = pl.program_id(1)

    @pl.when(k == 0)
    def _():
        # Fold the fc2 bias into the accumulator init.
        acc_ref[...] = jnp.broadcast_to(
            b2_ref[...].astype(jnp.float32), acc_ref.shape)

    # fc1 partial + bias + GELU on this hidden slice (stays in vregs).
    h = jnp.dot(x_ref[...].astype(w1_ref.dtype), w1_ref[...],
                preferred_element_type=jnp.float32)
    h = _gelu_tanh(h + b1_ref[...].astype(jnp.float32))

    # TODO(synk): nn.Dropout with the module default p=0.0 is the identity;
    # training-time dropout would use pltpu.prng_seed + pltpu.stateful_bernoulli.

    # fc2 partial, accumulated in f32.
    acc_ref[...] += jnp.dot(h.astype(w2_ref.dtype), w2_ref[...],
                            preferred_element_type=jnp.float32)

    @pl.when(k == pl.num_programs(1) - 1)
    def _():
        o_ref[...] = acc_ref[...].astype(o_ref.dtype)


def _round_up(n, m):
    return ((n + m - 1) // m) * m


def _pick_row_tile(m8, cap):
    """Largest multiple-of-8 divisor of m8 that is <= cap (no row padding)."""
    best = 8
    t = 8
    while t <= min(m8, cap):
        if m8 % t == 0:
            best = t
        t += 8
    return best


def _vmem_estimate(tm, d_in, th, d_out, x_bytes, w_bytes, o_bytes):
    est = 2 * tm * d_in * x_bytes        # x tile (double-buffered)
    est += 2 * tm * d_out * o_bytes      # out tile (double-buffered)
    est += 2 * d_in * th * w_bytes       # W1 block (double-buffered)
    est += 2 * 8 * th * w_bytes          # b1 block (sublane-padded)
    est += 2 * th * d_out * w_bytes      # W2 block (double-buffered)
    est += 2 * 8 * d_out * w_bytes       # b2 block
    est += tm * d_out * 4                # f32 accumulator scratch
    est += tm * th * 4                   # hidden-activation headroom
    return est


def _pick_hidden_tile(d_hidden, tm, d_in, d_out, x_bytes, w_bytes, o_bytes,
                      budget=40 << 20):
    """Largest multiple-of-128 divisor of d_hidden fitting the VMEM budget."""
    if d_hidden % 128 != 0:
        # Single full-extent hidden block (legal: equals the full array dim).
        return d_hidden
    best = 128
    t = 128
    while t <= d_hidden:
        if d_hidden % t == 0 and _vmem_estimate(
                tm, d_in, t, d_out, x_bytes, w_bytes, o_bytes) <= budget:
            best = t
        t += 128
    return best


def feed_forward(x, w1, b1, w2, b2, *, block_rows=256, mxu_dtype=jnp.bfloat16):
    """FeedForward forward: fc2(GELU(fc1(x))), dropout p=0.0 -> identity.

    x:  (..., in_features)
    w1: (in_features, hidden_features), b1: (hidden_features,)
    w2: (hidden_features, out_features), b2: (out_features,)
    mxu_dtype: dtype for MXU operands (bf16 default, f32 accumulation in-kernel;
               None keeps the native dtype end-to-end).
    returns (..., out_features)
    """
    orig_shape = x.shape
    d_in = orig_shape[-1]
    d_hidden = w1.shape[1]
    d_out = w2.shape[1]
    assert w1.shape[0] == d_in and w2.shape[0] == d_hidden
    assert b1.shape == (d_hidden,) and b2.shape == (d_out,)

    x2 = x.reshape(-1, d_in)
    m = x2.shape[0]

    # --- MXU operand dtype (accumulation is always f32 in-kernel). ---
    w1c = w1 if mxu_dtype is None else w1.astype(mxu_dtype)
    w2c = w2 if mxu_dtype is None else w2.astype(mxu_dtype)

    # --- Lane-dense output: pad out_features up to a multiple of 128. ---
    d_out_p = _round_up(d_out, 128)
    b2_2d = b2.reshape(1, d_out)
    if d_out_p != d_out:
        w2c = jnp.pad(w2c, ((0, 0), (0, d_out_p - d_out)))
        b2_2d = jnp.pad(b2_2d, ((0, 0), (0, d_out_p - d_out)))
    b1_2d = b1.reshape(1, d_hidden)

    # --- Row tiling: multiple-of-8 divisor of the row count (no jnp.pad in the
    # common case); capped at ceil(m/2) so there are >= 2 row tiles for v7x's
    # two TensorCores to share (harmless on single-TC v5e/v6e). ---
    m8 = _round_up(m, 8)
    cap = min(block_rows, max(8, _round_up(-(-m8 // 2), 8)))
    tm = _pick_row_tile(m8, cap)
    if m8 != m:
        x2 = jnp.pad(x2, ((0, m8 - m), (0, 0)))  # only when m % 8 != 0

    x_bytes = x2.dtype.itemsize
    w_bytes = w1c.dtype.itemsize
    o_bytes = jnp.dtype(x.dtype).itemsize

    # --- Hidden tiling under a fixed VMEM budget. ---
    th = _pick_hidden_tile(d_hidden, tm, d_in, d_out_p, x_bytes, w_bytes, o_bytes)

    vmem_est = _vmem_estimate(tm, d_in, th, d_out_p, x_bytes, w_bytes, o_bytes)
    vmem_limit = int(min(64 << 20, max(16 << 20, int(vmem_est * 1.5))))

    out = pl.pallas_call(
        _ffn_kernel,
        out_shape=jax.ShapeDtypeStruct((m8, d_out_p), x.dtype),
        grid_spec=pltpu.PrefetchScalarGridSpec(
            num_scalar_prefetch=0,
            grid=(m8 // tm, d_hidden // th),
            in_specs=[
                pl.BlockSpec((tm, d_in), lambda i, k: (i, 0)),
                pl.BlockSpec((d_in, th), lambda i, k: (0, k)),
                pl.BlockSpec((1, th), lambda i, k: (0, k)),
                pl.BlockSpec((th, d_out_p), lambda i, k: (k, 0)),
                pl.BlockSpec((1, d_out_p), lambda i, k: (0, 0)),
            ],
            out_specs=pl.BlockSpec((tm, d_out_p), lambda i, k: (i, 0)),
            scratch_shapes=[pltpu.VMEM((tm, d_out_p), jnp.float32)],
        ),
        compiler_params=pltpu.CompilerParams(
            dimension_semantics=("parallel", "arbitrary"),
            vmem_limit_bytes=vmem_limit,
        ),
    )(x2, w1c, b1_2d, w2c, b2_2d)

    if m8 != m:
        out = out[:m]
    if d_out_p != d_out:
        out = out[:, :d_out]
    return out.reshape(*orig_shape[:-1], d_out)


def feed_forward_ref(x, w1, b1, w2, b2, mxu_dtype=None):
    """Pure-JAX reference mirroring the kernel math (same GELU, same casts)."""
    xm = x if mxu_dtype is None else x.astype(mxu_dtype)
    w1m = w1 if mxu_dtype is None else w1.astype(mxu_dtype)
    w2m = w2 if mxu_dtype is None else w2.astype(mxu_dtype)
    h = jnp.dot(xm, w1m, preferred_element_type=jnp.float32) + b1.astype(jnp.float32)
    h = _gelu_tanh(h)
    hm = h if mxu_dtype is None else h.astype(mxu_dtype)
    out = jnp.dot(hm, w2m, preferred_element_type=jnp.float32) + b2.astype(jnp.float32)
    return out.astype(x.dtype)


if __name__ == "__main__":
    # Small shapes consistent with the module: tokens (B=2, seq=8),
    # in_features=128, hidden_features=256, out_features=128.
    B, S = 2, 8
    D_IN, D_HID, D_OUT = 128, 256, 128

    key = jax.random.PRNGKey(0)
    kx, k1, k2, k3, k4 = jax.random.split(key, 5)
    x = jax.random.normal(kx, (B, S, D_IN), dtype=jnp.float32)
    w1 = jax.random.normal(k1, (D_IN, D_HID), dtype=jnp.float32) * 0.05
    b1 = jax.random.normal(k2, (D_HID,), dtype=jnp.float32) * 0.05
    w2 = jax.random.normal(k3, (D_HID, D_OUT), dtype=jnp.float32) * 0.05
    b2 = jax.random.normal(k4, (D_OUT,), dtype=jnp.float32) * 0.05

    # Default path: bf16 MXU operands, f32 accumulation.
    out_bf16 = jax.block_until_ready(feed_forward(x, w1, b1, w2, b2))
    ref_bf16 = feed_forward_ref(x, w1, b1, w2, b2, mxu_dtype=jnp.bfloat16)
    assert out_bf16.shape == (B, S, D_OUT), out_bf16.shape
    assert jnp.allclose(out_bf16, ref_bf16, rtol=2e-2, atol=2e-2), (
        "bf16 path mismatch vs reference: max abs err "
        f"{jnp.max(jnp.abs(out_bf16 - ref_bf16))}")

    # Full-f32 MXU path against the pure-f32 reference.
    out_f32 = jax.block_until_ready(feed_forward(x, w1, b1, w2, b2, mxu_dtype=None))
    ref_f32 = feed_forward_ref(x, w1, b1, w2, b2)
    assert jnp.allclose(out_f32, ref_f32, rtol=2e-3, atol=2e-3), (
        "f32 path mismatch vs reference: max abs err "
        f"{jnp.max(jnp.abs(out_f32 - ref_f32))}")

    print("KERNEL_OK")
</pallas_src>

<mosaic_0001>
module attributes {stable_mosaic.version = 11 : i64} {
  func.func @_ffn_kernel(%arg0: i32, %arg1: i32, %arg2: memref<8x128xf32, #tpu.memory_space<vmem>>, %arg3: memref<128x256xbf16, #tpu.memory_space<vmem>>, %arg4: memref<1x256xf32, #tpu.memory_space<vmem>>, %arg5: memref<256x128xbf16, #tpu.memory_space<vmem>>, %arg6: memref<1x128xf32, #tpu.memory_space<vmem>>, %arg7: memref<8x128xf32, #tpu.memory_space<vmem>>, %arg8: memref<8x128xf32, #tpu.memory_space<vmem>>) attributes {dimension_semantics = [#tpu.dimension_semantics<parallel>, #tpu.dimension_semantics<arbitrary>], iteration_bounds = array<i64: 2, 1>, scalar_prefetch = 0 : i64, scratch_operands = 1 : i64, tpu.core_type = #tpu.core_type<tc>, window_params = [{transform_indices = @transform_0, window_bounds = array<i64: 8, 128>}, {transform_indices = @transform_1, window_bounds = array<i64: 128, 256>}, {transform_indices = @transform_2, window_bounds = array<i64: 1, 256>}, {transform_indices = @transform_3, window_bounds = array<i64: 256, 128>}, {pipeline_mode = #tpu.pipeline_mode<synchronous>, transform_indices = @transform_4, window_bounds = array<i64: 1, 128>}, {transform_indices = @transform_5, window_bounds = array<i64: 8, 128>}]} {
    %c0_i32 = arith.constant 0 : i32
    %0 = arith.cmpi eq, %arg1, %c0_i32 : i32
    %1 = arith.extui %0 : i1 to i32
    %c0_i32_0 = arith.constant 0 : i32
    %2 = arith.cmpi ne, %1, %c0_i32_0 : i32
    scf.if %2 {
      %c0_19 = arith.constant 0 : index
      %c0_20 = arith.constant 0 : index
      %32 = vector.load %arg6[%c0_19, %c0_20] : memref<1x128xf32, #tpu.memory_space<vmem>>, vector<1x128xf32>
      %33 = vector.shape_cast %32 : vector<1x128xf32> to vector<1x128xf32>
      %34 = vector.broadcast %33 : vector<1x128xf32> to vector<8x128xf32>
      %c0_21 = arith.constant 0 : index
      %c0_22 = arith.constant 0 : index
      %35 = vector.load %arg8[%c0_21, %c0_22] : memref<8x128xf32, #tpu.memory_space<vmem>>, vector<8x128xf32>
      tpu.vector_store %arg8[%c0_21, %c0_22], %34 {strides = array<i32>} : memref<8x128xf32, #tpu.memory_space<vmem>>, vector<8x128xf32>,
    } else {
    }
    %c0 = arith.constant 0 : index
    %c0_1 = arith.constant 0 : index
    %3 = vector.load %arg2[%c0, %c0_1] : memref<8x128xf32, #tpu.memory_space<vmem>>, vector<8x128xf32>
    %4 = arith.truncf %3 : vector<8x128xf32> to vector<8x128xbf16>
    %c0_2 = arith.constant 0 : index
    %c0_3 = arith.constant 0 : index
    %5 = vector.load %arg3[%c0_2, %c0_3] : memref<128x256xbf16, #tpu.memory_space<vmem>>, vector<128x256xbf16>
    %cst = arith.constant dense<0.000000e+00> : vector<8x256xf32>
    %6 = tpu.matmul %4, %5, %cst {dimension_numbers = #tpu.dot_dimension_numbers<[1], [0], [0], [1], [0, 0, 1, 1], [], []>} : vector<8x128xbf16>, vector<128x256xbf16>, vector<8x256xf32> -> vector<8x256xf32>
    %c0_4 = arith.constant 0 : index
    %c0_5 = arith.constant 0 : index
    %7 = vector.load %arg4[%c0_4, %c0_5] : memref<1x256xf32, #tpu.memory_space<vmem>>, vector<1x256xf32>
    %8 = vector.broadcast %7 : vector<1x256xf32> to vector<8x256xf32>
    %9 = arith.addf %6, %8 : vector<8x256xf32>
    %cst_6 = arith.constant 5.000000e-01 : f32
    %10 = vector.broadcast %cst_6 : f32 to vector<8x256xf32>
    %11 = arith.mulf %10, %9 : vector<8x256xf32>
    %cst_7 = arith.constant 4.471500e-02 : f32
    %12 = vector.broadcast %cst_7 : f32 to vector<8x256xf32>
    %13 = arith.mulf %12, %9 : vector<8x256xf32>
    %14 = arith.mulf %13, %9 : vector<8x256xf32>
    %15 = arith.mulf %14, %9 : vector<8x256xf32>
    %16 = arith.addf %9, %15 : vector<8x256xf32>
    %cst_8 = arith.constant 0.797884583 : f32
    %17 = vector.broadcast %cst_8 : f32 to vector<8x256xf32>
    %18 = arith.mulf %17, %16 : vector<8x256xf32>
    %19 = math.tanh %18 : vector<8x256xf32>
    %cst_9 = arith.constant 1.000000e+00 : f32
    %20 = vector.broadcast %cst_9 : f32 to vector<8x256xf32>
    %21 = arith.addf %20, %19 : vector<8x256xf32>
    %22 = arith.mulf %11, %21 : vector<8x256xf32>
    %c0_10 = arith.constant 0 : index
    %c0_11 = arith.constant 0 : index
    %23 = vector.load %arg8[%c0_10, %c0_11] : memref<8x128xf32, #tpu.memory_space<vmem>>, vector<8x128xf32>
    %24 = arith.truncf %22 : vector<8x256xf32> to vector<8x256xbf16>
    %c0_12 = arith.constant 0 : index
    %c0_13 = arith.constant 0 : index
    %25 = vector.load %arg5[%c0_12, %c0_13] : memref<256x128xbf16, #tpu.memory_space<vmem>>, vector<256x128xbf16>
    %cst_14 = arith.constant dense<0.000000e+00> : vector<8x128xf32>
    %26 = tpu.matmul %24, %25, %cst_14 {dimension_numbers = #tpu.dot_dimension_numbers<[1], [0], [0], [1], [0, 0, 1, 1], [], []>} : vector<8x256xbf16>, vector<256x128xbf16>, vector<8x128xf32> -> vector<8x128xf32>
    %27 = arith.addf %23, %26 : vector<8x128xf32>
    %c0_15 = arith.constant 0 : index
    %c0_16 = arith.constant 0 : index
    %28 = vector.load %arg8[%c0_15, %c0_16] : memref<8x128xf32, #tpu.memory_space<vmem>>, vector<8x128xf32>
    tpu.vector_store %arg8[%c0_15, %c0_16], %27 {strides = array<i32>} : memref<8x128xf32, #tpu.memory_space<vmem>>, vector<8x128xf32>,
    %c0_i32_17 = arith.constant 0 : i32
    %29 = arith.cmpi eq, %arg1, %c0_i32_17 : i32
    %30 = arith.extui %29 : i1 to i32
    %c0_i32_18 = arith.constant 0 : i32
    %31 = arith.cmpi ne, %30, %c0_i32_18 : i32
    scf.if %31 {
      %c0_19 = arith.constant 0 : index
      %c0_20 = arith.constant 0 : index
      %32 = vector.load %arg8[%c0_19, %c0_20] : memref<8x128xf32, #tpu.memory_space<vmem>>, vector<8x128xf32>
      %c0_21 = arith.constant 0 : index
      %c0_22 = arith.constant 0 : index
      %33 = vector.load %arg7[%c0_21, %c0_22] : memref<8x128xf32, #tpu.memory_space<vmem>>, vector<8x128xf32>
      tpu.vector_store %arg7[%c0_21, %c0_22], %32 {strides = array<i32>} : memref<8x128xf32, #tpu.memory_space<vmem>>, vector<8x128xf32>,
    } else {
    }
    return
  }
  func.func @transform_0(%arg0: i32, %arg1: i32) -> (i32, i32) {
    %c0_i32 = arith.constant 0 : i32
    %c0_i32_0 = arith.constant 0 : i32
    return %arg0, %c0_i32 : i32, i32
  }
  func.func @transform_1(%arg0: i32, %arg1: i32) -> (i32, i32) {
    %c0_i32 = arith.constant 0 : i32
    %c0_i32_0 = arith.constant 0 : i32
    return %c0_i32, %arg1 : i32, i32
  }
  func.func @transform_2(%arg0: i32, %arg1: i32) -> (i32, i32) {
    %c0_i32 = arith.constant 0 : i32
    %c0_i32_0 = arith.constant 0 : i32
    return %c0_i32, %arg1 : i32, i32
  }
  func.func @transform_3(%arg0: i32, %arg1: i32) -> (i32, i32) {
    %c0_i32 = arith.constant 0 : i32
    %c0_i32_0 = arith.constant 0 : i32
    return %arg1, %c0_i32 : i32, i32
  }
  func.func @transform_4(%arg0: i32, %arg1: i32) -> (i32, i32) {
    %c0_i32 = arith.constant 0 : i32
    %c0_i32_0 = arith.constant 0 : i32
    %c0_i32_1 = arith.constant 0 : i32
    return %c0_i32, %c0_i32_0 : i32, i32
  }
  func.func @transform_5(%arg0: i32, %arg1: i32) -> (i32, i32) {
    %c0_i32 = arith.constant 0 : i32
    %c0_i32_0 = arith.constant 0 : i32
    return %arg0, %c0_i32 : i32, i32
  }
}

</mosaic_0001>

<llo_original>
// kernel: tpu_custom_call.1
$region0: #{tpu_custom_call.1}
  #allocation0 [shape = 'u32[]', space=smem, size = 0x4, offset = 0x4, fixed_abs, tag = 'smem constant byte address 0x4 - core index']
  #allocation1 [shape = 'u32[144,128]{1,0:T(1,128)}', space=vmem, size = 0x12000, scoped, tag = 'internal scratch']
  #allocation2 [shape = 'f32[8,128]{1,0:T(8,128)}', space=vmem, size = 0x1000, scoped, tag = 'scratch operand']
  %s0 = inlined_call_operand.hbm [shape: f32[16,128], index: 0, kind: input, shape index: {}]
  %s1 = inlined_call_operand.hbm [shape: bf16[128,256], index: 1, kind: input, shape index: {}]
  %s2 = inlined_call_operand.vmem [shape: f32[1,256], index: 2, kind: input, shape index: {}]
  %s3 = inlined_call_operand.hbm [shape: bf16[256,128], index: 3, kind: input, shape index: {}]
  %s4 = inlined_call_operand.vmem [shape: f32[1,128], index: 4, kind: input, shape index: {}]
  %s5 = inlined_call_operand.hbm [shape: f32[16,128], index: 5, kind: output, shape index: {}]
  %s6 = sld [smem:[#allocation0]]
  $region73: #{tpu_custom_call.1} parent=0
    _
  %s8 = ssub.s32 1, %s6
  %s9 = scalar_select 0, %s8, %s6
  $region1: #{tpu_custom_call.1} parent=0
    #allocation3 [shape = 'u8[8192]{0}', space=vmem, size = 0x2000, scoped, tag = 'input window, operand 0']
    #allocation4 [shape = 's32[2]{0}', space=sflag, size = 0x8, scoped, tag = 'scoped memory for tpu_custom_call.1']
    #allocation5 [shape = 's32[2]{0}', space=sflag, size = 0x8, scoped, tag = 'scoped memory for tpu_custom_call.1']
    #allocation6 [shape = 'u8[65536]{0}', space=vmem, size = 0x10000, scoped, tag = 'input window, operand 1, single buffered']
    #allocation7 [shape = 's32[1]{0}', space=sflag, size = 0x4, scoped, tag = 'scoped memory for tpu_custom_call.1']
    #allocation8 [shape = 'u8[65536]{0}', space=vmem, size = 0x10000, scoped, tag = 'input window, operand 3, single buffered']
    #allocation9 [shape = 'u8[8192]{0}', space=vmem, size = 0x2000, scoped, tag = 'output window, operand 0']
    %10 = vsyncpa [#allocation4], 0
    %s11 = scalar_lea.sflag [#allocation4], 1
    %12 = vsyncpa %s11, 0
    %13 = vsyncpa [#allocation7], 0
    %14 = vsyncpa [#allocation5], 0
    %s15 = scalar_lea.sflag [#allocation5], 1
    %16 = vsyncpa %s15, 0
    loop: start=0, step=1, limit=4
    $region2: #{tpu_custom_call.1} parent=1 // loop_pre_header
      _
    $region3: #{tpu_custom_call.1} parent=1 // loop_header
      %s18 = sphi 0, %s22
      %p19 = scmp.ge.s32.totalorder %s18, 4
      %s25 = sphi 0, %s37
      %s26 = sphi 0, %s33
      %s27 = sphi 0, %s25
      %s28 = sphi 0, %s26
      %s29 = sphi 0, %s27
      %s30 = sphi 0, %s28
      %s40 = sphi 0, %s42
      %s43 = sphi 0, %s40
      %s44 = sphi 0, %s43
      %s60 = sphi 0, %s44
      %s66 = sphi 0, %s68
      %s69 = sphi 0, %s66
      %s70 = sphi 0, %s69
      %s86 = sphi 0, %s70
      %s92 = sphi 0, %s94
      %s95 = sphi 0, %s92
      %s96 = sphi 0, %s95
      %s112 = sphi 0, %s96
      %s118 = sphi 0, %s120
      %s121 = sphi 0, %s118
      %s122 = sphi 0, %s121
      %s138 = sphi 0, %s122
      %s142 = sphi 0, %s142
      %s144 = sphi 0, %s142
      %s145 = sphi 0, %s144
      %s159 = sphi 0, %s145
      %s165 = sphi 0, %s167
      %s168 = sphi 0, %s165
      %s169 = sphi 0, %s168
      %s185 = sphi 0, %s169
    $region4: #{tpu_custom_call.1} parent=1 // loop_header_branch
      %21 = sbr.rel (%p19) target = $region8
    $region5: #{tpu_custom_call.1} parent=1 // loop_body
      %s23 = ssub.s32 %s18, 1
      %s24 = ssub.s32 %s18, 2
      %s31 = sadd.s32 1, %s26
      %p32 = scmp.ge.s32.totalorder %s31, 1
      %s33 = scalar_select %p32, 0, %s31
      %s34 = sadd.s32 1, %s25
      %s35 = scalar_select %p32, %s34, %s25
      %p36 = scmp.ge.s32.totalorder %s35, 2
      %s37 = scalar_select %p36, 0, %s35
      %s38 = ssub.s32 %s25, %s37
      %p39 = scmp.eq.s32.totalorder %s38, 0
      %s41 = sadd.s32 %s40, 1
      %s42 = scalar_select %p39, %s40, %s41
      %p45 = pneg %p39
      %p46 = scmp.eq.s32.totalorder %s18, 1
      %p47 = por %p45, %p46
      %p48 = scmp.ne.s32.totalorder %s40, %s43
      %p49 = scmp.eq.s32.totalorder %s18, 0
      %p50 = por %p48, %p49
      %p51 = scmp.ne.s32.totalorder %s40, %s43
      %p52 = scmp.eq.s32.totalorder %s23, 1
      %p53 = por %p51, %p52
      %p54 = scmp.ne.s32.totalorder %s43, %s44
      %p55 = scmp.eq.s32.totalorder %s23, 0
      %p56 = por %p54, %p55
      %p57 = scmp.ne.s32.totalorder %s43, %s44
      %p58 = scmp.eq.s32.totalorder %s24, 1
      %p59 = por %p57, %p58
      %p61 = scmp.ne.s32.totalorder %s44, %s60
      %p62 = scmp.eq.s32.totalorder %s24, 0
      %p63 = por %p61, %p62
      %s64 = ssub.s32 %s26, %s33
      %p65 = scmp.eq.s32.totalorder %s64, 0
      %s67 = sadd.s32 %s66, 1
      %s68 = scalar_select %p65, %s66, %s67
      %p71 = pneg %p65
      %p72 = scmp.eq.s32.totalorder %s18, 1
      %p73 = por %p71, %p72
      %p74 = scmp.ne.s32.totalorder %s66, %s69
      %p75 = scmp.eq.s32.totalorder %s18, 0
      %p76 = por %p74, %p75
      %p77 = scmp.ne.s32.totalorder %s66, %s69
      %p78 = scmp.eq.s32.totalorder %s23, 1
      %p79 = por %p77, %p78
      %p80 = scmp.ne.s32.totalorder %s69, %s70
      %p81 = scmp.eq.s32.totalorder %s23, 0
      %p82 = por %p80, %p81
      %p83 = scmp.ne.s32.totalorder %s69, %s70
      %p84 = scmp.eq.s32.totalorder %s24, 1
      %p85 = por %p83, %p84
      %p87 = scmp.ne.s32.totalorder %s70, %s86
      %p88 = scmp.eq.s32.totalorder %s24, 0
      %p89 = por %p87, %p88
      %s90 = ssub.s32 %s26, %s33
      %p91 = scmp.eq.s32.totalorder %s90, 0
      %s93 = sadd.s32 %s92, 1
      %s94 = scalar_select %p91, %s92, %s93
      %p97 = pneg %p91
      %p98 = scmp.eq.s32.totalorder %s18, 1
      %p99 = por %p97, %p98
      %p100 = scmp.ne.s32.totalorder %s92, %s95
      %p101 = scmp.eq.s32.totalorder %s18, 0
      %p102 = por %p100, %p101
      %p103 = scmp.ne.s32.totalorder %s92, %s95
      %p104 = scmp.eq.s32.totalorder %s23, 1
      %p105 = por %p103, %p104
      %p106 = scmp.ne.s32.totalorder %s95, %s96
      %p107 = scmp.eq.s32.totalorder %s23, 0
      %p108 = por %p106, %p107
      %p109 = scmp.ne.s32.totalorder %s95, %s96
      %p110 = scmp.eq.s32.totalorder %s24, 1
      %p111 = por %p109, %p110
      %p113 = scmp.ne.s32.totalorder %s96, %s112
      %p114 = scmp.eq.s32.totalorder %s24, 0
      %p115 = por %p113, %p114
      %s116 = ssub.s32 %s26, %s33
      %p117 = scmp.eq.s32.totalorder %s116, 0
      %s119 = sadd.s32 %s118, 1
      %s120 = scalar_select %p117, %s118, %s119
      %p123 = pneg %p117
      %p124 = scmp.eq.s32.totalorder %s18, 1
      %p125 = por %p123, %p124
      %p126 = scmp.ne.s32.totalorder %s118, %s121
      %p127 = scmp.eq.s32.totalorder %s18, 0
      %p128 = por %p126, %p127
      %p129 = scmp.ne.s32.totalorder %s118, %s121
      %p130 = scmp.eq.s32.totalorder %s23, 1
      %p131 = por %p129, %p130
      %p132 = scmp.ne.s32.totalorder %s121, %s122
      %p133 = scmp.eq.s32.totalorder %s23, 0
      %p134 = por %p132, %p133
      %p135 = scmp.ne.s32.totalorder %s121, %s122
      %p136 = scmp.eq.s32.totalorder %s24, 1
      %p137 = por %p135, %p136
      %p139 = scmp.ne.s32.totalorder %s122, %s138
      %p140 = scmp.eq.s32.totalorder %s24, 0
      %p141 = por %p139, %p140
      %s143 = sadd.s32 %s142, 1
      %p146 = scmp.eq.s32.totalorder %s18, 1
      %p147 = scmp.ne.s32.totalorder %s142, %s144
      %p148 = scmp.eq.s32.totalorder %s18, 0
      %p149 = por %p147, %p148
      %p150 = scmp.ne.s32.totalorder %s142, %s144
      %p151 = scmp.eq.s32.totalorder %s23, 1
      %p152 = por %p150, %p151
      %p153 = scmp.ne.s32.totalorder %s144, %s145
      %p154 = scmp.eq.s32.totalorder %s23, 0
      %p155 = por %p153, %p154
      %p156 = scmp.ne.s32.totalorder %s144, %s145
      %p157 = scmp.eq.s32.totalorder %s24, 1
      %p158 = por %p156, %p157
      %p160 = scmp.ne.s32.totalorder %s145, %s159
      %p161 = scmp.eq.s32.totalorder %s24, 0
      %p162 = por %p160, %p161
      %s163 = ssub.s32 %s25, %s37
      %p164 = scmp.eq.s32.totalorder %s163, 0
      %s166 = sadd.s32 %s165, 1
      %s167 = scalar_select %p164, %s165, %s166
      %p170 = pneg %p164
      %p171 = scmp.eq.s32.totalorder %s18, 1
      %p172 = por %p170, %p171
      %p173 = scmp.ne.s32.totalorder %s165, %s168
      %p174 = scmp.eq.s32.totalorder %s18, 0
      %p175 = por %p173, %p174
      %p176 = scmp.ne.s32.totalorder %s165, %s168
      %p177 = scmp.eq.s32.totalorder %s23, 1
      %p178 = por %p176, %p177
      %p179 = scmp.ne.s32.totalorder %s168, %s169
      %p180 = scmp.eq.s32.totalorder %s23, 0
      %p181 = por %p179, %p180
      %p182 = scmp.ne.s32.totalorder %s168, %s169
      %p183 = scmp.eq.s32.totalorder %s24, 1
      %p184 = por %p182, %p183
      %p186 = scmp.ne.s32.totalorder %s169, %s185
      %p187 = scmp.eq.s32.totalorder %s24, 0
      %p188 = por %p186, %p187
      %p189 = scmp.le.s32.totalorder 1, %s18
      %p190 = scmp.lt.s32.totalorder %s18, 3
      %p191 = pnand %p189, %p190
      %p192 = pneg %p191
      // Predicated region
      $region9: #{tpu_custom_call.1} parent=5 // pred_check
        _
      $region10: #{tpu_custom_call.1} parent=5 // pred_check_branch
        %194 = sbr.rel (%p191) target = $region12
      $region11: #{tpu_custom_call.1} parent=5 // pred_region
        %s195 = ssub.s32 %s18, 1
        // Predicated region
        $region13: #{tpu_custom_call.1} parent=11 // pred_check
          %p196 = pneg %p82
        $region14: #{tpu_custom_call.1} parent=11 // pred_check_branch
          %198 = sbr.rel (%p196) target = $region16
        $region15: #{tpu_custom_call.1} parent=11 // pred_region
          %s199 = smul.u32 2, %s28
          %s201 = ssub.s32 2048, 2048
          %202 = vsyncadd [#allocation7], %s201
          %s203 = smul.addr %s199, 64
          %s204 = scalar_lea.hbm %s1, %s203
          %s205 = sshll.u32 [#allocation6], 4
          %s206 = int_to_ptr.vmem [resolvable:$true] %s205
          %211 = dma.hbm_to_vmem [thread:$0]  %s204, 2048, %s206, [#allocation7], 128, 128, 8
        $region16: #{tpu_custom_call.1} parent=11 // pred_fallthru
          _
        // Predicated region
        $region17: #{tpu_custom_call.1} parent=11 // pred_check
          %p212 = pneg %p108
        $region18: #{tpu_custom_call.1} parent=11 // pred_check_branch
          %214 = sbr.rel (%p212) target = $region20
        $region19: #{tpu_custom_call.1} parent=11 // pred_region
          %s215 = smul.u32 2, %s28
          %p216 = scmp.lt.s32.totalorder %s215, 1
          %s217 = scalar_select %p216, %s215, 1
          %s218 = scalar_lea.vmem %s2, %s217
          %s219 = smul.u32 2, %s28
        $region20: #{tpu_custom_call.1} parent=11 // pred_fallthru
          _
        // Predicated region
        $region21: #{tpu_custom_call.1} parent=11 // pred_check
          %p220 = pneg %p134
        $region22: #{tpu_custom_call.1} parent=11 // pred_check_branch
          %222 = sbr.rel (%p220) target = $region24
        $region23: #{tpu_custom_call.1} parent=11 // pred_region
          %s223 = smul.u32 32, %s28
          %s225 = ssub.s32 2048, 2048
          %226 = vsyncadd [#allocation7], %s225
          %s227 = smul.addr %s223, 64
          %s228 = scalar_lea.hbm %s3, %s227
          %s229 = sshll.u32 [#allocation8], 4
          %s230 = int_to_ptr.vmem [resolvable:$true] %s229
          %235 = dma.hbm_to_vmem [thread:$0]  %s228, 2048, %s230, [#allocation7], 64, 64, 4
        $region24: #{tpu_custom_call.1} parent=11 // pred_fallthru
          _
        // Predicated region
        $region25: #{tpu_custom_call.1} parent=11 // pred_check
          %p236 = pneg %p155
        $region26: #{tpu_custom_call.1} parent=11 // pred_check_branch
          %238 = sbr.rel (%p236) target = $region28
        $region27: #{tpu_custom_call.1} parent=11 // pred_region
          _
        $region28: #{tpu_custom_call.1} parent=11 // pred_fallthru
          _
      $region12: #{tpu_custom_call.1} parent=5 // pred_fallthru
        _
      %p239 = scmp.lt.s32.totalorder %s18, 2
      // Predicated region
      $region29: #{tpu_custom_call.1} parent=5 // pred_check
        %p240 = pneg %p239
      $region30: #{tpu_custom_call.1} parent=5 // pred_check_branch
        %242 = sbr.rel (%p240) target = $region32
      $region31: #{tpu_custom_call.1} parent=5 // pred_region
        // Predicated region
        $region33: #{tpu_custom_call.1} parent=31 // pred_check
          %p243 = pneg %p50
        $region34: #{tpu_custom_call.1} parent=31 // pred_check_branch
          %245 = sbr.rel (%p243) target = $region36
        $region35: #{tpu_custom_call.1} parent=31 // pred_region
          %s246 = sand.u32 %s40, 1
          %s247 = scalar_lea.sflag [#allocation4], %s246
          %s248 = sand.u32 %s40, 1
          %s249 = smul.addr %s248, 8
          %s250 = scalar_lea.vmem [#allocation3], %s249
          %s252 = ssub.s32 128, 128
          %253 = vsyncadd %s247, %s252
          %s254 = smul.addr %s25, 128
          %s255 = scalar_lea.hbm %s0, %s254
          %s257 = sshll.u32 %s250, 4
          %s258 = int_to_ptr.vmem [resolvable:$true] %s257
          %260 = dma.hbm_to_vmem [thread:$0]  %s255, 128, %s258, %s247
        $region36: #{tpu_custom_call.1} parent=31 // pred_fallthru
          _
      $region32: #{tpu_custom_call.1} parent=5 // pred_fallthru
        _
      %p261 = scmp.le.s32.totalorder 1, %s18
      %p262 = scmp.lt.s32.totalorder %s18, 3
      %p263 = pnand %p261, %p262
      %p264 = pneg %p263
      // Predicated region
      $region37: #{tpu_custom_call.1} parent=5 // pred_check
        _
      $region38: #{tpu_custom_call.1} parent=5 // pred_check_branch
        %266 = sbr.rel (%p263) target = $region40
      $region39: #{tpu_custom_call.1} parent=5 // pred_region
        %s267 = ssub.s32 %s18, 1
        %s268 = sand.u32 %s43, 1
        %s269 = scalar_lea.sflag [#allocation4], %s268
        %s270 = sand.u32 %s43, 1
        %s271 = smul.addr %s270, 8
        %s272 = scalar_lea.vmem [#allocation3], %s271
        // Predicated region
        $region41: #{tpu_custom_call.1} parent=39 // pred_check
          %p273 = pneg %p56
        $region42: #{tpu_custom_call.1} parent=39 // pred_check_branch
          %275 = sbr.rel (%p273) target = $region44
        $region43: #{tpu_custom_call.1} parent=39 // pred_region
          %276 = dma.done %s269, 128
        $region44: #{tpu_custom_call.1} parent=39 // pred_fallthru
          _
        // Predicated region
        $region45: #{tpu_custom_call.1} parent=39 // pred_check
          %p277 = pneg %p82
        $region46: #{tpu_custom_call.1} parent=39 // pred_check_branch
          %279 = sbr.rel (%p277) target = $region48
        $region47: #{tpu_custom_call.1} parent=39 // pred_region
          %280 = dma.done [#allocation7], 2048
        $region48: #{tpu_custom_call.1} parent=39 // pred_fallthru
          _
        // Predicated region
        $region49: #{tpu_custom_call.1} parent=39 // pred_check
          %p281 = pneg %p134
        $region50: #{tpu_custom_call.1} parent=39 // pred_check_branch
          %283 = sbr.rel (%p281) target = $region52
        $region51: #{tpu_custom_call.1} parent=39 // pred_region
          %284 = dma.done [#allocation7], 2048
        $region52: #{tpu_custom_call.1} parent=39 // pred_fallthru
          _
        %s285 = sand.u32 %s43, 1
        %s286 = scalar_lea.sflag [#allocation4], %s285
        %s287 = sand.u32 %s43, 1
        %s288 = smul.addr %s287, 8
        %s289 = scalar_lea.vmem [#allocation3], %s288
        %p290 = pneg %p56
        %p291 = pneg %p53
        %p292 = pneg %p82
        %p293 = pneg %p79
        %s294 = smul.u32 2, %s28
        %p295 = scmp.lt.s32.totalorder %s294, 1
        %s296 = scalar_select %p295, %s294, 1
        %s297 = scalar_lea.vmem %s2, %s296
        %p298 = pneg %p108
        %p299 = pneg %p105
        %p300 = pneg %p134
        %p301 = pneg %p131
        %p302 = pneg %p155
        %p303 = pneg %p152
        %p304 = pneg %p181
        %p305 = pneg %p178
        %s306 = sand.u32 %s168, 1
        %s307 = scalar_lea.sflag [#allocation5], %s306
        %s308 = sand.u32 %s168, 1
        %s309 = smul.addr %s308, 8
        %s310 = scalar_lea.vmem [#allocation9], %s309
        %s311 = smul.u32 2, %s28
        %s312 = smul.u32 2, %s28
        %p313 = scmp.lt.s32.totalorder %s312, 1
        %s314 = scalar_select %p313, %s312, 1
        %s315 = scalar_lea.vmem %s2, %s314
        %s316 = smul.u32 2, %s28
        %s317 = smul.u32 32, %s28
        %p319 = scmp.eq.s32.totalorder %s28, 0
        // Predicated region
        $region53: #{tpu_custom_call.1} parent=39 // pred_check
          %p320 = pneg %p319
        $region54: #{tpu_custom_call.1} parent=39 // pred_check_branch
          %322 = sbr.rel (%p320) target = $region56
        $region55: #{tpu_custom_call.1} parent=39 // pred_region
          %v323 = vld [vmem:[%s4] sm:$0x1]
          %v325 = vlaneseq
          %v326 = vshrl.u32 %v325, 7
          %v327 = vsub.s32 0, %v326
          %v328 = vrot.slane %v323, %v327
          %330 = vst [vmem:[#allocation2] sm:$0xff] %v328
        $region56: #{tpu_custom_call.1} parent=39 // pred_fallthru
          _
        %v331 = vld [vmem:[%s272] sm:$0xff]
        %v332 = vpack.c.bf16 %v331, %v331
        %v333 = vld [vmem:[#allocation6] sm:$0xff]
        %v334 = vld [vmem:[#allocation6 + $0x8] sm:$0xff]
        %v335 = vld [vmem:[#allocation6 + $0x10] sm:$0xff]
        %v336 = vld [vmem:[#allocation6 + $0x18] sm:$0xff]
        %v337 = vld [vmem:[#allocation6 + $0x20] sm:$0xff]
        %v338 = vld [vmem:[#allocation6 + $0x28] sm:$0xff]
        %v339 = vld [vmem:[#allocation6 + $0x30] sm:$0xff]
        %v340 = vld [vmem:[#allocation6 + $0x38] sm:$0xff]
        %v341 = vld [vmem:[#allocation6 + $0x40] sm:$0xff]
        %v342 = vld [vmem:[#allocation6 + $0x48] sm:$0xff]
        %v343 = vld [vmem:[#allocation6 + $0x50] sm:$0xff]
        %v344 = vld [vmem:[#allocation6 + $0x58] sm:$0xff]
        %v345 = vld [vmem:[#allocation6 + $0x60] sm:$0xff]
        %v346 = vld [vmem:[#allocation6 + $0x68] sm:$0xff]
        %v347 = vld [vmem:[#allocation6 + $0x70] sm:$0xff]
        %v348 = vld [vmem:[#allocation6 + $0x78] sm:$0xff]
        %v349 = vld [vmem:[%s315] sm:$0x3]
        %v351 = vlaneseq
        %v352 = vshrl.u32 %v351, 7
        %v353 = vsub.s32 0, %v352
        %v354 = vrot.slane %v349, %v353
        %v355 = vlaneseq
        %v356 = vshrl.u32 %v355, 7
        %v357 = vsub.s32 1, %v356
        %v358 = vrot.slane %v349, %v357
        %v377 = vunpack.c.l.b16 %v333
        %v378 = vunpack.c.h.b16 %v333
        %v379 = vunpack.c.l.b16 %v334
        %v380 = vunpack.c.h.b16 %v334
        %v381 = vunpack.c.l.b16 %v335
        %v382 = vunpack.c.h.b16 %v335
        %v383 = vunpack.c.l.b16 %v336
        %v384 = vunpack.c.h.b16 %v336
        %v385 = vunpack.c.l.b16 %v337
        %v386 = vunpack.c.h.b16 %v337
        %v387 = vunpack.c.l.b16 %v338
        %v388 = vunpack.c.h.b16 %v338
        %v389 = vunpack.c.l.b16 %v339
        %v390 = vunpack.c.h.b16 %v339
        %v391 = vunpack.c.l.b16 %v340
        %v392 = vunpack.c.h.b16 %v340
        %v393 = vunpack.c.l.b16 %v341
        %v394 = vunpack.c.h.b16 %v341
        %v395 = vunpack.c.l.b16 %v342
        %v396 = vunpack.c.h.b16 %v342
        %v397 = vunpack.c.l.b16 %v343
        %v398 = vunpack.c.h.b16 %v343
        %v399 = vunpack.c.l.b16 %v344
        %v400 = vunpack.c.h.b16 %v344
        %v401 = vunpack.c.l.b16 %v345
        %v402 = vunpack.c.h.b16 %v345
        %v403 = vunpack.c.l.b16 %v346
        %v404 = vunpack.c.h.b16 %v346
        %v405 = vunpack.c.l.b16 %v347
        %v406 = vunpack.c.h.b16 %v347
        %v407 = vunpack.c.l.b16 %v348
        %v408 = vunpack.c.h.b16 %v348
        %v409 = vpack.c.b16 %v379, %v377
        %v410 = vpack.c.b16 %v380, %v378
        %v411 = vpack.c.b16 %v383, %v381
        %v412 = vpack.c.b16 %v384, %v382
        %v413 = vpack.c.b16 %v387, %v385
        %v414 = vpack.c.b16 %v388, %v386
        %v415 = vpack.c.b16 %v391, %v389
        %v416 = vpack.c.b16 %v392, %v390
        %v417 = vpack.c.b16 %v395, %v393
        %v418 = vpack.c.b16 %v396, %v394
        %v419 = vpack.c.b16 %v399, %v397
        %v420 = vpack.c.b16 %v400, %v398
        %v421 = vpack.c.b16 %v403, %v401
        %v422 = vpack.c.b16 %v404, %v402
        %v423 = vpack.c.b16 %v407, %v405
        %v424 = vpack.c.b16 %v408, %v406
        %441 = vmatprep.subr.bf16.mxu0 %v410
        %442 = vmatpush1.bf16.msra.mxu0 %v409
        %443 = vmatprep.subr.bf16.mxu0 %v412
        %444 = vmatpush1.bf16.msra.mxu0 %v411
        %445 = vmatprep.subr.bf16.mxu0 %v414
        %446 = vmatpush1.bf16.msra.mxu0 %v413
        %447 = vmatprep.subr.bf16.mxu0 %v416
        %448 = vmatpush1.bf16.msra.mxu0 %v415
        %449 = vmatprep.subr.bf16.mxu0 %v418
        %450 = vmatpush1.bf16.msra.mxu0 %v417
        %451 = vmatprep.subr.bf16.mxu0 %v420
        %452 = vmatpush1.bf16.msra.mxu0 %v419
        %453 = vmatprep.subr.bf16.mxu0 %v422
        %454 = vmatpush1.bf16.msra.mxu0 %v421
        %455 = vmatprep.subr.bf16.mxu0 %v424
        %456 = vmatpush1.bf16.msra.mxu0 %v423
        %457 = vmatprep.subr.bf16.mxu0 0
        %458 = vmatpush1.bf16.msra.mxu0 0
        %459 = vmatprep.subr.bf16.mxu0 0
        %460 = vmatpush1.bf16.msra.mxu0 0
        %461 = vmatprep.subr.bf16.mxu0 0
        %462 = vmatpush1.bf16.msra.mxu0 0
        %463 = vmatprep.subr.bf16.mxu0 0
        %464 = vmatpush1.bf16.msra.mxu0 0
        %465 = vmatprep.subr.bf16.mxu0 0
        %466 = vmatpush1.bf16.msra.mxu0 0
        %467 = vmatprep.subr.bf16.mxu0 0
        %468 = vmatpush1.bf16.msra.mxu0 0
        %469 = vmatprep.subr.bf16.mxu0 0
        %470 = vmatpush1.bf16.msra.mxu0 0
        %471 = vmatprep.subr.bf16.mxu0 0
        %472 = vmatpush1.bf16.msra.mxu0 0
        %473 = vmatprep.mubr.bf16.mxu0 0
        %474 = vmatmul.mubr.bf16.gmra.mrb[0].mxu0 %v332
        %v475 = vpop.f32.mrb[0].mxu0
        %v476 = vadd.f32 %v354, %v475
        %v477 = vpop.f32.mrb[0].mxu0
        %v478 = vadd.f32 %v358, %v477
        %v479 = vpop.f32.mrb[0].mxu0
        %v480 = vpop.f32.mrb[0].mxu0
        %481 = vdwg.mxu0
        %v482 = vmul.f32 %v476, 0.5
        %v483 = vmul.f32 %v478, 0.5
        %v484 = vmul.f32 %v476, 0.044715
        %v485 = vmul.f32 %v478, 0.044715
        %v486 = vmul.f32 %v484, %v476
        %v487 = vmul.f32 %v485, %v478
        %v488 = vmul.f32 %v486, %v476
        %v489 = vmul.f32 %v487, %v478
        %v490 = vadd.f32 %v476, %v488
        %v491 = vadd.f32 %v478, %v489
        %v492 = vmul.f32 %v490, 0.7978846
        %v493 = vmul.f32 %v491, 0.7978846
        %v494 = vtanh.pop %v492
        %v495 = vtanh.pop %v493
        %v496 = vadd.f32 %v494, 1.0
        %v497 = vadd.f32 %v495, 1.0
        %v498 = vmul.f32 %v482, %v496
        %v499 = vmul.f32 %v483, %v497
        %v500 = vld [vmem:[#allocation2] sm:$0xff]
        %v501 = vpack.c.bf16 %v498, %v498
        %v502 = vpack.c.bf16 %v499, %v499
        %v503 = vld [vmem:[#allocation8] sm:$0xf]
        %v504 = vld [vmem:[#allocation8 + $0x4] sm:$0xf]
        %v505 = vld [vmem:[#allocation8 + $0x8] sm:$0xf]
        %v506 = vld [vmem:[#allocation8 + $0xc] sm:$0xf]
        %v507 = vld [vmem:[#allocation8 + $0x10] sm:$0xf]
        %v508 = vld [vmem:[#allocation8 + $0x14] sm:$0xf]
        %v509 = vld [vmem:[#allocation8 + $0x18] sm:$0xf]
        %v510 = vld [vmem:[#allocation8 + $0x1c] sm:$0xf]
        %v511 = vld [vmem:[#allocation8 + $0x20] sm:$0xf]
        %v512 = vld [vmem:[#allocation8 + $0x24] sm:$0xf]
        %v513 = vld [vmem:[#allocation8 + $0x28] sm:$0xf]
        %v514 = vld [vmem:[#allocation8 + $0x2c] sm:$0xf]
        %v515 = vld [vmem:[#allocation8 + $0x30] sm:$0xf]
        %v516 = vld [vmem:[#allocation8 + $0x34] sm:$0xf]
        %v517 = vld [vmem:[#allocation8 + $0x38] sm:$0xf]
        %v518 = vld [vmem:[#allocation8 + $0x3c] sm:$0xf]
        %v519 = vld [vmem:[#allocation8 + $0x40] sm:$0xf]
        %v520 = vld [vmem:[#allocation8 + $0x44] sm:$0xf]
        %v521 = vld [vmem:[#allocation8 + $0x48] sm:$0xf]
        %v522 = vld [vmem:[#allocation8 + $0x4c] sm:$0xf]
        %v523 = vld [vmem:[#allocation8 + $0x50] sm:$0xf]
        %v524 = vld [vmem:[#allocation8 + $0x54] sm:$0xf]
        %v525 = vld [vmem:[#allocation8 + $0x58] sm:$0xf]
        %v526 = vld [vmem:[#allocation8 + $0x5c] sm:$0xf]
        %v527 = vld [vmem:[#allocation8 + $0x60] sm:$0xf]
        %v528 = vld [vmem:[#allocation8 + $0x64] sm:$0xf]
        %v529 = vld [vmem:[#allocation8 + $0x68] sm:$0xf]
        %v530 = vld [vmem:[#allocation8 + $0x6c] sm:$0xf]
        %v531 = vld [vmem:[#allocation8 + $0x70] sm:$0xf]
        %v532 = vld [vmem:[#allocation8 + $0x74] sm:$0xf]
        %v533 = vld [vmem:[#allocation8 + $0x78] sm:$0xf]
        %v534 = vld [vmem:[#allocation8 + $0x7c] sm:$0xf]
        %v567 = vunpack.c.l.b16 %v503
        %v568 = vunpack.c.l.b16 %v504
        %v569 = vunpack.c.l.b16 %v505
        %v570 = vunpack.c.l.b16 %v506
        %v571 = vunpack.c.l.b16 %v507
        %v572 = vunpack.c.l.b16 %v508
        %v573 = vunpack.c.l.b16 %v509
        %v574 = vunpack.c.l.b16 %v510
        %v575 = vunpack.c.l.b16 %v511
        %v576 = vunpack.c.l.b16 %v512
        %v577 = vunpack.c.l.b16 %v513
        %v578 = vunpack.c.l.b16 %v514
        %v579 = vunpack.c.l.b16 %v515
        %v580 = vunpack.c.l.b16 %v516
        %v581 = vunpack.c.l.b16 %v517
        %v582 = vunpack.c.l.b16 %v518
        %v583 = vunpack.c.l.b16 %v519
        %v584 = vunpack.c.l.b16 %v520
        %v585 = vunpack.c.l.b16 %v521
        %v586 = vunpack.c.l.b16 %v522
        %v587 = vunpack.c.l.b16 %v523
        %v588 = vunpack.c.l.b16 %v524
        %v589 = vunpack.c.l.b16 %v525
        %v590 = vunpack.c.l.b16 %v526
        %v591 = vunpack.c.l.b16 %v527
        %v592 = vunpack.c.l.b16 %v528
        %v593 = vunpack.c.l.b16 %v529
        %v594 = vunpack.c.l.b16 %v530
        %v595 = vunpack.c.l.b16 %v531
        %v596 = vunpack.c.l.b16 %v532
        %v597 = vunpack.c.l.b16 %v533
        %v598 = vunpack.c.l.b16 %v534
        %v599 = vpack.c.b16 %v568, %v567
        %v600 = vpack.c.b16 %v570, %v569
        %v601 = vpack.c.b16 %v572, %v571
        %v602 = vpack.c.b16 %v574, %v573
        %v603 = vpack.c.b16 %v576, %v575
        %v604 = vpack.c.b16 %v578, %v577
        %v605 = vpack.c.b16 %v580, %v579
        %v606 = vpack.c.b16 %v582, %v581
        %v607 = vpack.c.b16 %v584, %v583
        %v608 = vpack.c.b16 %v586, %v585
        %v609 = vpack.c.b16 %v588, %v587
        %v610 = vpack.c.b16 %v590, %v589
        %v611 = vpack.c.b16 %v592, %v591
        %v612 = vpack.c.b16 %v594, %v593
        %v613 = vpack.c.b16 %v596, %v595
        %v614 = vpack.c.b16 %v598, %v597
        %631 = vmatprep.subr.bf16.mxu0 0
        %632 = vmatpush1.bf16.msra.mxu0 %v599
        %633 = vmatprep.subr.bf16.mxu0 0
        %634 = vmatpush1.bf16.msra.mxu0 %v600
        %635 = vmatprep.subr.bf16.mxu0 0
        %636 = vmatpush1.bf16.msra.mxu0 %v601
        %637 = vmatprep.subr.bf16.mxu0 0
        %638 = vmatpush1.bf16.msra.mxu0 %v602
        %639 = vmatprep.subr.bf16.mxu0 0
        %640 = vmatpush1.bf16.msra.mxu0 %v603
        %641 = vmatprep.subr.bf16.mxu0 0
        %642 = vmatpush1.bf16.msra.mxu0 %v604
        %643 = vmatprep.subr.bf16.mxu0 0
        %644 = vmatpush1.bf16.msra.mxu0 %v605
        %645 = vmatprep.subr.bf16.mxu0 0
        %646 = vmatpush1.bf16.msra.mxu0 %v606
        %647 = vmatprep.subr.bf16.mxu0 0
        %648 = vmatpush1.bf16.msra.mxu0 %v607
        %649 = vmatprep.subr.bf16.mxu0 0
        %650 = vmatpush1.bf16.msra.mxu0 %v608
        %651 = vmatprep.subr.bf16.mxu0 0
        %652 = vmatpush1.bf16.msra.mxu0 %v609
        %653 = vmatprep.subr.bf16.mxu0 0
        %654 = vmatpush1.bf16.msra.mxu0 %v610
        %655 = vmatprep.subr.bf16.mxu0 0
        %656 = vmatpush1.bf16.msra.mxu0 %v611
        %657 = vmatprep.subr.bf16.mxu0 0
        %658 = vmatpush1.bf16.msra.mxu0 %v612
        %659 = vmatprep.subr.bf16.mxu0 0
        %660 = vmatpush1.bf16.msra.mxu0 %v613
        %661 = vmatprep.subr.bf16.mxu0 0
        %662 = vmatpush1.bf16.msra.mxu0 %v614
        %663 = vmatprep.mubr.bf16.mxu0 %v502
        %664 = vmatmul.mubr.bf16.gmra.mrb[0].mxu0 %v501
        %v665 = vpop.f32.mrb[0].mxu0
        %v666 = vadd.f32 0.0, %v665
        %v667 = vpop.f32.mrb[0].mxu0
        %v668 = vpop.f32.mrb[0].mxu0
        %v669 = vpop.f32.mrb[0].mxu0
        %670 = vdwg.mxu0
        %v671 = vadd.f32 %v500, %v666
        %672 = vst [vmem:[#allocation2] sm:$0xff] %v671
        // Predicated region
        $region57: #{tpu_custom_call.1} parent=39 // pred_check
          %p673 = pneg %p319
        $region58: #{tpu_custom_call.1} parent=39 // pred_check_branch
          %675 = sbr.rel (%p673) target = $region60
        $region59: #{tpu_custom_call.1} parent=39 // pred_region
          %v676 = vld [vmem:[#allocation2] sm:$0xff]
          %677 = vst [vmem:[%s310] sm:$0xff] %v676
        $region60: #{tpu_custom_call.1} parent=39 // pred_fallthru
          _
        %s678 = sand.u32 %s168, 1
        %s679 = scalar_lea.sflag [#allocation5], %s678
        %s680 = sand.u32 %s168, 1
        %s681 = smul.addr %s680, 8
        %s682 = scalar_lea.vmem [#allocation9], %s681
        // Predicated region
        $region61: #{tpu_custom_call.1} parent=39 // pred_check
          %p683 = pneg %p178
        $region62: #{tpu_custom_call.1} parent=39 // pred_check_branch
          %685 = sbr.rel (%p683) target = $region64
        $region63: #{tpu_custom_call.1} parent=39 // pred_region
          %s687 = ssub.s32 128, 128
          %688 = vsyncadd %s679, %s687
          %s689 = smul.addr %s27, 128
          %s690 = scalar_lea.hbm %s5, %s689
          %s692 = sshll.u32 %s682, 4
          %s693 = int_to_ptr.vmem [resolvable:$true] %s692
          %695 = dma.vmem_to_hbm [thread:$0]  %s693, 128, %s690, %s679
        $region64: #{tpu_custom_call.1} parent=39 // pred_fallthru
          _
      $region40: #{tpu_custom_call.1} parent=5 // pred_fallthru
        _
      %p696 = scmp.le.s32.totalorder 2, %s18
      // Predicated region
      $region65: #{tpu_custom_call.1} parent=5 // pred_check
        %p697 = pneg %p696
      $region66: #{tpu_custom_call.1} parent=5 // pred_check_branch
        %699 = sbr.rel (%p697) target = $region68
      $region67: #{tpu_custom_call.1} parent=5 // pred_region
        %s700 = ssub.s32 %s18, 2
        // Predicated region
        $region69: #{tpu_custom_call.1} parent=67 // pred_check
          %p701 = pneg %p184
        $region70: #{tpu_custom_call.1} parent=67 // pred_check_branch
          %703 = sbr.rel (%p701) target = $region72
        $region71: #{tpu_custom_call.1} parent=67 // pred_region
          %s704 = sand.u32 %s169, 1
          %s705 = scalar_lea.sflag [#allocation5], %s704
          %s706 = sand.u32 %s169, 1
          %s707 = smul.addr %s706, 8
          %s708 = scalar_lea.vmem [#allocation9], %s707
          %709 = dma.done %s705, 128
        $region72: #{tpu_custom_call.1} parent=67 // pred_fallthru
          _
      $region68: #{tpu_custom_call.1} parent=5 // pred_fallthru
        _
    $region6: #{tpu_custom_call.1} parent=1 // loop_footer
      %s22 = sadd.s32 1, %s18
    $region7: #{tpu_custom_call.1} parent=1 // loop_footer_branch
      %17 = sbr.rel target = $region3
    $region8: #{tpu_custom_call.1} parent=1 // loop_exit
      _
    %710 = vsyncpa [#allocation4], 1
    %s711 = scalar_lea.sflag [#allocation4], 1
    %712 = vsyncpa %s711, 1
    %713 = vsyncpa [#allocation7], 1
    %714 = vsyncpa [#allocation5], 1
    %s715 = scalar_lea.sflag [#allocation5], 1
    %716 = vsyncpa %s715, 1

</llo_original>
